<compile_context>
chip_gen: v5e
topology: v5e:2x2
jax: 0.10.0
libtpu: 0.0.40
codegen_flags: <defaults>
</compile_context>

<pallas_src>
import jax
import jax.numpy as jnp
from jax import lax
from jax.experimental import pallas as pl
from jax.experimental.pallas import tpu as pltpu

# ----------------------- synthetic config (small) -----------------------
N_VOCAB = 50
EMBED = 32
HIDDEN = 32
NUM_LAYERS = 1      # TODO(synk): LSTM inter-layer dropout is inactive at eval / single layer, so not modeled
PAD_SIZE = 8        # sequence length == MaxPool1d kernel size -> pooled length 1
NUM_CLASSES = 4
BATCH = 2


# ----------------------------- Pallas kernel ----------------------------
def textrcnn_kernel(toks_ref, emb_ref, wih2_ref, whh_ref, b_ref, fcw_ref, fcb_ref, out_ref):
    # toks_ref: [2*L*B, 1] int32  rows 0:LB   -> time-major forward tokens  (row t*B+b = tok[b, t])
    #                             rows LB:2LB -> time-major reversed tokens (row t*B+b = tok[b, L-1-t])
    # emb_ref:  [V, E]   f32   full embedding table (kept f32 so the pooled-embed path is exact)
    # wih2_ref: [2E, 8H] bf16  block-structured: rows 0:E feed fwd gate cols, rows E:2E feed bwd cols
    # whh_ref:  [2H, 8H] bf16  block-structured: rows 0:H = h_fwd, rows H:2H = h_bwd
    # b_ref:    [1, 8H]  f32   (b_ih + b_hh), gate order (i,f,o,g), direction-interleaved per gate
    # fcw_ref:  [E+2H, C] bf16, fcb_ref: [1, C] f32
    NTOK = toks_ref.shape[0]          # 2 * L * B
    V, E = emb_ref.shape
    G = wih2_ref.shape[1]             # 8H
    H2 = whh_ref.shape[0]             # 2H
    B = out_ref.shape[0]
    LB = NTOK // 2
    L = LB // B

    # ---- fused embedding gather: one-hot matmul row select (exact, f32) ----
    toks = toks_ref[...]                                                        # [NTOK, 1] int32
    onehot = (lax.broadcasted_iota(jnp.int32, (NTOK, V), 1) == toks).astype(jnp.float32)
    embed_cat = jnp.dot(onehot, emb_ref[...], preferred_element_type=jnp.float32)   # [NTOK, E]
    emb_fwd = embed_cat[0:LB, :]      # time-major forward embeddings
    emb_bwd = embed_cat[LB:, :]       # time-major reversed embeddings

    # ---- hoisted input projection; direction/time selection folded into wih2 ----
    # (single cast: the table stays f32 for the exact pooled-embed path below)
    xx = jnp.concatenate([emb_fwd, emb_bwd], axis=1).astype(jnp.bfloat16)       # [LB, 2E]
    gx = jnp.dot(xx, wih2_ref[...], preferred_element_type=jnp.float32) + b_ref[...]   # [LB, 8H]

    whh = whh_ref[...]                                                          # bf16 [2H, 8H]
    is_g = lax.broadcasted_iota(jnp.int32, (B, G), 1) >= 3 * H2                 # tanh lanes (g gate)

    h = jnp.zeros((B, H2), jnp.float32)       # [h_fwd | h_bwd] lane-stacked
    c = jnp.zeros((B, H2), jnp.float32)
    m = jnp.zeros((B, H2), jnp.float32)       # running max of relu(h) over time

    # fused bidirectional recurrence, fully unrolled (L static)
    # TODO(synk): whh could be held in the MXU across steps via matmul_push_rhs/acc_lhs
    #             (and MRB accumulation on v7x); skipped here for cross-chip portability.
    for t in range(L):
        gates = gx[t * B:(t + 1) * B, :] + jnp.dot(
            h.astype(jnp.bfloat16), whh, preferred_element_type=jnp.float32)   # [B, 8H]
        # full-width EUP ops + static-mask blend (no mid-vreg lane split on the chain)
        act = jnp.where(is_g, jnp.tanh(gates), jax.nn.sigmoid(gates))
        c = act[:, H2:2 * H2] * c + act[:, 0:H2] * act[:, 3 * H2:G]
        h = act[:, 2 * H2:3 * H2] * jnp.tanh(c)
        # max-pool over time commutes with relu; m starts at 0 so max(m, h) == max(m, relu(h))
        m = jnp.maximum(m, h)

    # pooled relu(embed): max over time (time-major rows), clamped at 0
    m_emb = emb_fwd[0:B, :]
    for t in range(1, L):
        m_emb = jnp.maximum(m_emb, emb_fwd[t * B:(t + 1) * B, :])
    m_emb = jnp.maximum(m_emb, 0.0)                                             # [B, E]

    # fused FC: feature order [embed | h_fwd | h_bwd], single dot
    feat = jnp.concatenate([m_emb, m], axis=1).astype(jnp.bfloat16)             # [B, E+2H]
    out_ref[...] = (jnp.dot(feat, fcw_ref[...], preferred_element_type=jnp.float32)
                    + fcb_ref[...])


# --------------------- repack params into kernel layout --------------------
def prepare_kernel_params(params):
    """PyTorch-layout params -> fused/permuted kernel-layout params (bf16 MXU weights)."""
    H = HIDDEN
    E = EMBED

    def perm_gates(w):          # (i, f, g, o) -> (i, f, o, g) along the last axis
        return jnp.concatenate(
            [w[..., 0:H], w[..., H:2 * H], w[..., 3 * H:4 * H], w[..., 2 * H:3 * H]],
            axis=-1)

    wih_f = perm_gates(params["wih_f"])
    wih_b = perm_gates(params["wih_b"])
    whh_f = perm_gates(params["whh_f"])
    whh_b = perm_gates(params["whh_b"])
    b_f = perm_gates(params["b_f"])
    b_b = perm_gates(params["b_b"])

    zE = jnp.zeros((E, H), jnp.float32)
    zH = jnp.zeros((H, H), jnp.float32)

    # per-gate direction interleave of columns; rows block-structured by source
    # (fwd cols read rows 0:E / 0:H, bwd cols read rows E:2E / H:2H)
    wih2_cols, whh_cols, b_cols = [], [], []
    for k in range(4):
        sl = slice(k * H, (k + 1) * H)
        wih2_cols.append(jnp.concatenate([wih_f[:, sl], zE], axis=0))   # fwd gate-k cols
        wih2_cols.append(jnp.concatenate([zE, wih_b[:, sl]], axis=0))   # bwd gate-k cols
        whh_cols.append(jnp.concatenate([whh_f[:, sl], zH], axis=0))
        whh_cols.append(jnp.concatenate([zH, whh_b[:, sl]], axis=0))
        b_cols.append(b_f[:, sl])
        b_cols.append(b_b[:, sl])

    return dict(
        wih2=jnp.concatenate(wih2_cols, axis=1).astype(jnp.bfloat16),   # [2E, 8H]
        whh=jnp.concatenate(whh_cols, axis=1).astype(jnp.bfloat16),     # [2H, 8H]
        b=jnp.concatenate(b_cols, axis=1),                              # [1, 8H] f32
        fcw=params["fc_w"].astype(jnp.bfloat16),                        # [E+2H, C]
        fcb=params["fc_b"],                                             # [1, C] f32
    )


# ------------------------------- wrapper ---------------------------------
@jax.jit
def textrcnn_forward(tokens, embedding, kparams):
    B, L = tokens.shape
    # glue: build time-major forward + reversed token streams (tiny int32 ops);
    # the embedding gather itself happens inside the kernel.
    tok_tm = jnp.transpose(tokens).reshape(L * B, 1)
    tok_rev_tm = jnp.transpose(tokens[:, ::-1]).reshape(L * B, 1)
    toks_cat = jnp.concatenate([tok_tm, tok_rev_tm], axis=0).astype(jnp.int32)  # [2LB, 1]

    vmem = pl.BlockSpec(memory_space=pltpu.MemorySpace.VMEM)
    return pl.pallas_call(
        textrcnn_kernel,
        out_shape=jax.ShapeDtypeStruct((B, NUM_CLASSES), jnp.float32),
        in_specs=[vmem] * 7,
        out_specs=vmem,
    )(toks_cat, embedding, kparams["wih2"], kparams["whh"], kparams["b"],
      kparams["fcw"], kparams["fcb"])


# ------------------------ deterministic parameters ------------------------
def init_params(key):
    ks = jax.random.split(key, 12)

    def u(k, shape, bound):
        return jax.random.uniform(k, shape, jnp.float32, -bound, bound)

    emb = jax.random.normal(ks[0], (N_VOCAB, EMBED), jnp.float32)
    emb = emb.at[N_VOCAB - 1].set(0.0)                  # padding_idx row zeroed

    kb = 1.0 / float(jnp.sqrt(jnp.float32(HIDDEN)))
    # forward direction (stored transposed: [in, 4H]), combined bias b_ih + b_hh
    wih_f = u(ks[1], (EMBED, 4 * HIDDEN), kb)
    whh_f = u(ks[2], (HIDDEN, 4 * HIDDEN), kb)
    b_f = (u(ks[3], (1, 4 * HIDDEN), kb) + u(ks[4], (1, 4 * HIDDEN), kb))
    # backward direction
    wih_b = u(ks[5], (EMBED, 4 * HIDDEN), kb)
    whh_b = u(ks[6], (HIDDEN, 4 * HIDDEN), kb)
    b_b = (u(ks[7], (1, 4 * HIDDEN), kb) + u(ks[8], (1, 4 * HIDDEN), kb))

    kfc = 1.0 / float(jnp.sqrt(jnp.float32(2 * HIDDEN + EMBED)))
    fc_w = u(ks[9], (2 * HIDDEN + EMBED, NUM_CLASSES), kfc)   # transposed
    fc_b = u(ks[10], (1, NUM_CLASSES), kfc)

    return dict(embedding=emb, wih_f=wih_f, whh_f=whh_f, b_f=b_f,
                wih_b=wih_b, whh_b=whh_b, b_b=b_b, fc_w=fc_w, fc_b=fc_b)


# ----------------------------- pure-JAX reference -------------------------
def _lstm_dir_ref(x, wih, whh, b, reverse):
    B, L, _ = x.shape
    H = whh.shape[0]
    h = jnp.zeros((B, H), jnp.float32)
    c = jnp.zeros((B, H), jnp.float32)
    outs = [None] * L
    order = range(L - 1, -1, -1) if reverse else range(L)
    for t in order:
        gates = x[:, t] @ wih + h @ whh + b
        i_g = jax.nn.sigmoid(gates[:, 0:H])
        f_g = jax.nn.sigmoid(gates[:, H:2 * H])
        g_g = jnp.tanh(gates[:, 2 * H:3 * H])
        o_g = jax.nn.sigmoid(gates[:, 3 * H:4 * H])
        c = f_g * c + i_g * g_g
        h = o_g * jnp.tanh(c)
        outs[t] = h
    return jnp.stack(outs, axis=1)                       # [B, L, H]


def forward_ref(tokens, params):
    embed = params["embedding"][tokens]
    hf = _lstm_dir_ref(embed, params["wih_f"], params["whh_f"], params["b_f"][0], False)
    hb = _lstm_dir_ref(embed, params["wih_b"], params["whh_b"], params["b_b"][0], True)
    out = jnp.concatenate([embed, hf, hb], axis=2)       # cat((embed, lstm_out), 2)
    out = jnp.maximum(out, 0.0)                          # relu
    pooled = jnp.max(out, axis=1)                        # MaxPool1d(pad_size) + squeeze
    return pooled @ params["fc_w"] + params["fc_b"]      # fc


# --------------------------------- main -----------------------------------
if __name__ == "__main__":
    key = jax.random.PRNGKey(0)
    pkey, tkey = jax.random.split(key)
    params = init_params(pkey)
    kparams = prepare_kernel_params(params)

    tokens = jax.random.randint(tkey, (BATCH, PAD_SIZE), 0, N_VOCAB - 1, dtype=jnp.int32)
    seq_len = jnp.full((BATCH,), PAD_SIZE, jnp.int32)    # second element of (x, seq_len); unused by forward

    logits = textrcnn_forward(tokens, params["embedding"], kparams)
    jax.block_until_ready(logits)

    ref = forward_ref(tokens, params)                    # pure-f32 reference
    assert logits.shape == (BATCH, NUM_CLASSES), logits.shape
    assert bool(jnp.all(jnp.isfinite(logits)))
    # bf16 MXU operands (f32 accumulation/elementwise) -> slightly looser tolerance
    assert bool(jnp.allclose(logits, ref, rtol=5e-2, atol=5e-2)), \
        f"max abs diff {float(jnp.max(jnp.abs(logits - ref)))}"
    print("KERNEL_OK")
</pallas_src>

<mosaic_0001>
module attributes {stable_mosaic.version = 11 : i64} {
  func.func @textrcnn_kernel(%arg0: memref<32x1xi32, #tpu.memory_space<vmem>>, %arg1: memref<50x32xf32, #tpu.memory_space<vmem>>, %arg2: memref<64x256xbf16, #tpu.memory_space<vmem>>, %arg3: memref<64x256xbf16, #tpu.memory_space<vmem>>, %arg4: memref<1x256xf32, #tpu.memory_space<vmem>>, %arg5: memref<96x4xbf16, #tpu.memory_space<vmem>>, %arg6: memref<1x4xf32, #tpu.memory_space<vmem>>, %arg7: memref<2x4xf32, #tpu.memory_space<vmem>>) attributes {dimension_semantics = [], scalar_prefetch = 0 : i64, scratch_operands = 0 : i64, tpu.core_type = #tpu.core_type<tc>} {
    %c0 = arith.constant 0 : index
    %c0_0 = arith.constant 0 : index
    %0 = vector.load %arg0[%c0, %c0_0] : memref<32x1xi32, #tpu.memory_space<vmem>>, vector<32x1xi32>
    %1 = tpu.iota {dimensions = array<i32: 1>} : vector<32x50xi32>
    %2 = vector.broadcast %0 : vector<32x1xi32> to vector<32x50xi32>
    %3 = arith.cmpi eq, %1, %2 : vector<32x50xi32>
    %4 = arith.extui %3 : vector<32x50xi1> to vector<32x50xi32>
    %5 = arith.sitofp %4 : vector<32x50xi32> to vector<32x50xf32>
    %c0_1 = arith.constant 0 : index
    %c0_2 = arith.constant 0 : index
    %6 = vector.load %arg1[%c0_1, %c0_2] : memref<50x32xf32, #tpu.memory_space<vmem>>, vector<50x32xf32>
    %cst = arith.constant dense<0.000000e+00> : vector<32x32xf32>
    %7 = tpu.matmul %5, %6, %cst {dimension_numbers = #tpu.dot_dimension_numbers<[1], [0], [0], [1], [0, 0, 1, 1], [], []>} : vector<32x50xf32>, vector<50x32xf32>, vector<32x32xf32> -> vector<32x32xf32>
    %8 = vector.extract_strided_slice %7 {offsets = [0, 0], sizes = [16, 32], strides = [1, 1]} : vector<32x32xf32> to vector<16x32xf32>
    %9 = vector.extract_strided_slice %7 {offsets = [16, 0], sizes = [16, 32], strides = [1, 1]} : vector<32x32xf32> to vector<16x32xf32>
    %10 = tpu.concatenate %8, %9 in 1 : vector<16x32xf32>, vector<16x32xf32> -> vector<16x64xf32>
    %11 = arith.truncf %10 : vector<16x64xf32> to vector<16x64xbf16>
    %c0_3 = arith.constant 0 : index
    %c0_4 = arith.constant 0 : index
    %12 = vector.load %arg2[%c0_3, %c0_4] : memref<64x256xbf16, #tpu.memory_space<vmem>>, vector<64x256xbf16>
    %cst_5 = arith.constant dense<0.000000e+00> : vector<16x256xf32>
    %13 = tpu.matmul %11, %12, %cst_5 {dimension_numbers = #tpu.dot_dimension_numbers<[1], [0], [0], [1], [0, 0, 1, 1], [], []>} : vector<16x64xbf16>, vector<64x256xbf16>, vector<16x256xf32> -> vector<16x256xf32>
    %c0_6 = arith.constant 0 : index
    %c0_7 = arith.constant 0 : index
    %14 = vector.load %arg4[%c0_6, %c0_7] : memref<1x256xf32, #tpu.memory_space<vmem>>, vector<1x256xf32>
    %15 = vector.broadcast %14 : vector<1x256xf32> to vector<16x256xf32>
    %16 = arith.addf %13, %15 : vector<16x256xf32>
    %c0_8 = arith.constant 0 : index
    %c0_9 = arith.constant 0 : index
    %17 = vector.load %arg3[%c0_8, %c0_9] : memref<64x256xbf16, #tpu.memory_space<vmem>>, vector<64x256xbf16>
    %18 = tpu.iota {dimensions = array<i32: 1>} : vector<2x256xi32>
    %c192_i32 = arith.constant 192 : i32
    %19 = vector.broadcast %c192_i32 : i32 to vector<2x256xi32>
    %20 = arith.cmpi sge, %18, %19 : vector<2x256xi32>
    %cst_10 = arith.constant 0.000000e+00 : f32
    %21 = vector.broadcast %cst_10 : f32 to vector<2x64xf32>
    %cst_11 = arith.constant 0.000000e+00 : f32
    %22 = vector.broadcast %cst_11 : f32 to vector<2x64xf32>
    %cst_12 = arith.constant 0.000000e+00 : f32
    %23 = vector.broadcast %cst_12 : f32 to vector<2x64xf32>
    %24 = vector.extract_strided_slice %16 {offsets = [0, 0], sizes = [2, 256], strides = [1, 1]} : vector<16x256xf32> to vector<2x256xf32>
    %25 = arith.truncf %21 : vector<2x64xf32> to vector<2x64xbf16>
    %cst_13 = arith.constant dense<0.000000e+00> : vector<2x256xf32>
    %26 = tpu.matmul %25, %17, %cst_13 {dimension_numbers = #tpu.dot_dimension_numbers<[1], [0], [0], [1], [0, 0, 1, 1], [], []>} : vector<2x64xbf16>, vector<64x256xbf16>, vector<2x256xf32> -> vector<2x256xf32>
    %27 = arith.addf %24, %26 : vector<2x256xf32>
    %28 = math.tanh %27 : vector<2x256xf32>
    %29 = arith.negf %27 : vector<2x256xf32>
    %30 = math.exp %29 : vector<2x256xf32>
    %cst_14 = arith.constant 1.000000e+00 : f32
    %31 = vector.broadcast %cst_14 : f32 to vector<2x256xf32>
    %32 = arith.addf %31, %30 : vector<2x256xf32>
    %33 = arith.divf %31, %32 : vector<2x256xf32>
    %34 = arith.select %20, %28, %33 : vector<2x256xi1>, vector<2x256xf32>
    %35 = vector.extract_strided_slice %34 {offsets = [0, 64], sizes = [2, 64], strides = [1, 1]} : vector<2x256xf32> to vector<2x64xf32>
    %36 = arith.mulf %35, %22 : vector<2x64xf32>
    %37 = vector.extract_strided_slice %34 {offsets = [0, 0], sizes = [2, 64], strides = [1, 1]} : vector<2x256xf32> to vector<2x64xf32>
    %38 = vector.extract_strided_slice %34 {offsets = [0, 192], sizes = [2, 64], strides = [1, 1]} : vector<2x256xf32> to vector<2x64xf32>
    %39 = arith.mulf %37, %38 : vector<2x64xf32>
    %40 = arith.addf %36, %39 : vector<2x64xf32>
    %41 = vector.extract_strided_slice %34 {offsets = [0, 128], sizes = [2, 64], strides = [1, 1]} : vector<2x256xf32> to vector<2x64xf32>
    %42 = math.tanh %40 : vector<2x64xf32>
    %43 = arith.mulf %41, %42 : vector<2x64xf32>
    %44 = arith.maximumf %23, %43 : vector<2x64xf32>
    %45 = vector.extract_strided_slice %16 {offsets = [2, 0], sizes = [2, 256], strides = [1, 1]} : vector<16x256xf32> to vector<2x256xf32>
    %46 = arith.truncf %43 : vector<2x64xf32> to vector<2x64xbf16>
    %cst_15 = arith.constant dense<0.000000e+00> : vector<2x256xf32>
    %47 = tpu.matmul %46, %17, %cst_15 {dimension_numbers = #tpu.dot_dimension_numbers<[1], [0], [0], [1], [0, 0, 1, 1], [], []>} : vector<2x64xbf16>, vector<64x256xbf16>, vector<2x256xf32> -> vector<2x256xf32>
    %48 = arith.addf %45, %47 : vector<2x256xf32>
    %49 = math.tanh %48 : vector<2x256xf32>
    %50 = arith.negf %48 : vector<2x256xf32>
    %51 = math.exp %50 : vector<2x256xf32>
    %cst_16 = arith.constant 1.000000e+00 : f32
    %52 = vector.broadcast %cst_16 : f32 to vector<2x256xf32>
    %53 = arith.addf %52, %51 : vector<2x256xf32>
    %54 = arith.divf %52, %53 : vector<2x256xf32>
    %55 = arith.select %20, %49, %54 : vector<2x256xi1>, vector<2x256xf32>
    %56 = vector.extract_strided_slice %55 {offsets = [0, 64], sizes = [2, 64], strides = [1, 1]} : vector<2x256xf32> to vector<2x64xf32>
    %57 = arith.mulf %56, %40 : vector<2x64xf32>
    %58 = vector.extract_strided_slice %55 {offsets = [0, 0], sizes = [2, 64], strides = [1, 1]} : vector<2x256xf32> to vector<2x64xf32>
    %59 = vector.extract_strided_slice %55 {offsets = [0, 192], sizes = [2, 64], strides = [1, 1]} : vector<2x256xf32> to vector<2x64xf32>
    %60 = arith.mulf %58, %59 : vector<2x64xf32>
    %61 = arith.addf %57, %60 : vector<2x64xf32>
    %62 = vector.extract_strided_slice %55 {offsets = [0, 128], sizes = [2, 64], strides = [1, 1]} : vector<2x256xf32> to vector<2x64xf32>
    %63 = math.tanh %61 : vector<2x64xf32>
    %64 = arith.mulf %62, %63 : vector<2x64xf32>
    %65 = arith.maximumf %44, %64 : vector<2x64xf32>
    %66 = vector.extract_strided_slice %16 {offsets = [4, 0], sizes = [2, 256], strides = [1, 1]} : vector<16x256xf32> to vector<2x256xf32>
    %67 = arith.truncf %64 : vector<2x64xf32> to vector<2x64xbf16>
    %cst_17 = arith.constant dense<0.000000e+00> : vector<2x256xf32>
    %68 = tpu.matmul %67, %17, %cst_17 {dimension_numbers = #tpu.dot_dimension_numbers<[1], [0], [0], [1], [0, 0, 1, 1], [], []>} : vector<2x64xbf16>, vector<64x256xbf16>, vector<2x256xf32> -> vector<2x256xf32>
    %69 = arith.addf %66, %68 : vector<2x256xf32>
    %70 = math.tanh %69 : vector<2x256xf32>
    %71 = arith.negf %69 : vector<2x256xf32>
    %72 = math.exp %71 : vector<2x256xf32>
    %cst_18 = arith.constant 1.000000e+00 : f32
    %73 = vector.broadcast %cst_18 : f32 to vector<2x256xf32>
    %74 = arith.addf %73, %72 : vector<2x256xf32>
    %75 = arith.divf %73, %74 : vector<2x256xf32>
    %76 = arith.select %20, %70, %75 : vector<2x256xi1>, vector<2x256xf32>
    %77 = vector.extract_strided_slice %76 {offsets = [0, 64], sizes = [2, 64], strides = [1, 1]} : vector<2x256xf32> to vector<2x64xf32>
    %78 = arith.mulf %77, %61 : vector<2x64xf32>
    %79 = vector.extract_strided_slice %76 {offsets = [0, 0], sizes = [2, 64], strides = [1, 1]} : vector<2x256xf32> to vector<2x64xf32>
    %80 = vector.extract_strided_slice %76 {offsets = [0, 192], sizes = [2, 64], strides = [1, 1]} : vector<2x256xf32> to vector<2x64xf32>
    %81 = arith.mulf %79, %80 : vector<2x64xf32>
    %82 = arith.addf %78, %81 : vector<2x64xf32>
    %83 = vector.extract_strided_slice %76 {offsets = [0, 128], sizes = [2, 64], strides = [1, 1]} : vector<2x256xf32> to vector<2x64xf32>
    %84 = math.tanh %82 : vector<2x64xf32>
    %85 = arith.mulf %83, %84 : vector<2x64xf32>
    %86 = arith.maximumf %65, %85 : vector<2x64xf32>
    %87 = vector.extract_strided_slice %16 {offsets = [6, 0], sizes = [2, 256], strides = [1, 1]} : vector<16x256xf32> to vector<2x256xf32>
    %88 = arith.truncf %85 : vector<2x64xf32> to vector<2x64xbf16>
    %cst_19 = arith.constant dense<0.000000e+00> : vector<2x256xf32>
    %89 = tpu.matmul %88, %17, %cst_19 {dimension_numbers = #tpu.dot_dimension_numbers<[1], [0], [0], [1], [0, 0, 1, 1], [], []>} : vector<2x64xbf16>, vector<64x256xbf16>, vector<2x256xf32> -> vector<2x256xf32>
    %90 = arith.addf %87, %89 : vector<2x256xf32>
    %91 = math.tanh %90 : vector<2x256xf32>
    %92 = arith.negf %90 : vector<2x256xf32>
    %93 = math.exp %92 : vector<2x256xf32>
    %cst_20 = arith.constant 1.000000e+00 : f32
    %94 = vector.broadcast %cst_20 : f32 to vector<2x256xf32>
    %95 = arith.addf %94, %93 : vector<2x256xf32>
    %96 = arith.divf %94, %95 : vector<2x256xf32>
    %97 = arith.select %20, %91, %96 : vector<2x256xi1>, vector<2x256xf32>
    %98 = vector.extract_strided_slice %97 {offsets = [0, 64], sizes = [2, 64], strides = [1, 1]} : vector<2x256xf32> to vector<2x64xf32>
    %99 = arith.mulf %98, %82 : vector<2x64xf32>
    %100 = vector.extract_strided_slice %97 {offsets = [0, 0], sizes = [2, 64], strides = [1, 1]} : vector<2x256xf32> to vector<2x64xf32>
    %101 = vector.extract_strided_slice %97 {offsets = [0, 192], sizes = [2, 64], strides = [1, 1]} : vector<2x256xf32> to vector<2x64xf32>
    %102 = arith.mulf %100, %101 : vector<2x64xf32>
    %103 = arith.addf %99, %102 : vector<2x64xf32>
    %104 = vector.extract_strided_slice %97 {offsets = [0, 128], sizes = [2, 64], strides = [1, 1]} : vector<2x256xf32> to vector<2x64xf32>
    %105 = math.tanh %103 : vector<2x64xf32>
    %106 = arith.mulf %104, %105 : vector<2x64xf32>
    %107 = arith.maximumf %86, %106 : vector<2x64xf32>
    %108 = vector.extract_strided_slice %16 {offsets = [8, 0], sizes = [2, 256], strides = [1, 1]} : vector<16x256xf32> to vector<2x256xf32>
    %109 = arith.truncf %106 : vector<2x64xf32> to vector<2x64xbf16>
    %cst_21 = arith.constant dense<0.000000e+00> : vector<2x256xf32>
    %110 = tpu.matmul %109, %17, %cst_21 {dimension_numbers = #tpu.dot_dimension_numbers<[1], [0], [0], [1], [0, 0, 1, 1], [], []>} : vector<2x64xbf16>, vector<64x256xbf16>, vector<2x256xf32> -> vector<2x256xf32>
    %111 = arith.addf %108, %110 : vector<2x256xf32>
    %112 = math.tanh %111 : vector<2x256xf32>
    %113 = arith.negf %111 : vector<2x256xf32>
    %114 = math.exp %113 : vector<2x256xf32>
    %cst_22 = arith.constant 1.000000e+00 : f32
    %115 = vector.broadcast %cst_22 : f32 to vector<2x256xf32>
    %116 = arith.addf %115, %114 : vector<2x256xf32>
    %117 = arith.divf %115, %116 : vector<2x256xf32>
    %118 = arith.select %20, %112, %117 : vector<2x256xi1>, vector<2x256xf32>
    %119 = vector.extract_strided_slice %118 {offsets = [0, 64], sizes = [2, 64], strides = [1, 1]} : vector<2x256xf32> to vector<2x64xf32>
    %120 = arith.mulf %119, %103 : vector<2x64xf32>
    %121 = vector.extract_strided_slice %118 {offsets = [0, 0], sizes = [2, 64], strides = [1, 1]} : vector<2x256xf32> to vector<2x64xf32>
    %122 = vector.extract_strided_slice %118 {offsets = [0, 192], sizes = [2, 64], strides = [1, 1]} : vector<2x256xf32> to vector<2x64xf32>
    %123 = arith.mulf %121, %122 : vector<2x64xf32>
    %124 = arith.addf %120, %123 : vector<2x64xf32>
    %125 = vector.extract_strided_slice %118 {offsets = [0, 128], sizes = [2, 64], strides = [1, 1]} : vector<2x256xf32> to vector<2x64xf32>
    %126 = math.tanh %124 : vector<2x64xf32>
    %127 = arith.mulf %125, %126 : vector<2x64xf32>
    %128 = arith.maximumf %107, %127 : vector<2x64xf32>
    %129 = vector.extract_strided_slice %16 {offsets = [10, 0], sizes = [2, 256], strides = [1, 1]} : vector<16x256xf32> to vector<2x256xf32>
    %130 = arith.truncf %127 : vector<2x64xf32> to vector<2x64xbf16>
    %cst_23 = arith.constant dense<0.000000e+00> : vector<2x256xf32>
    %131 = tpu.matmul %130, %17, %cst_23 {dimension_numbers = #tpu.dot_dimension_numbers<[1], [0], [0], [1], [0, 0, 1, 1], [], []>} : vector<2x64xbf16>, vector<64x256xbf16>, vector<2x256xf32> -> vector<2x256xf32>
    %132 = arith.addf %129, %131 : vector<2x256xf32>
    %133 = math.tanh %132 : vector<2x256xf32>
    %134 = arith.negf %132 : vector<2x256xf32>
    %135 = math.exp %134 : vector<2x256xf32>
    %cst_24 = arith.constant 1.000000e+00 : f32
    %136 = vector.broadcast %cst_24 : f32 to vector<2x256xf32>
    %137 = arith.addf %136, %135 : vector<2x256xf32>
    %138 = arith.divf %136, %137 : vector<2x256xf32>
    %139 = arith.select %20, %133, %138 : vector<2x256xi1>, vector<2x256xf32>
    %140 = vector.extract_strided_slice %139 {offsets = [0, 64], sizes = [2, 64], strides = [1, 1]} : vector<2x256xf32> to vector<2x64xf32>
    %141 = arith.mulf %140, %124 : vector<2x64xf32>
    %142 = vector.extract_strided_slice %139 {offsets = [0, 0], sizes = [2, 64], strides = [1, 1]} : vector<2x256xf32> to vector<2x64xf32>
    %143 = vector.extract_strided_slice %139 {offsets = [0, 192], sizes = [2, 64], strides = [1, 1]} : vector<2x256xf32> to vector<2x64xf32>
    %144 = arith.mulf %142, %143 : vector<2x64xf32>
    %145 = arith.addf %141, %144 : vector<2x64xf32>
    %146 = vector.extract_strided_slice %139 {offsets = [0, 128], sizes = [2, 64], strides = [1, 1]} : vector<2x256xf32> to vector<2x64xf32>
    %147 = math.tanh %145 : vector<2x64xf32>
    %148 = arith.mulf %146, %147 : vector<2x64xf32>
    %149 = arith.maximumf %128, %148 : vector<2x64xf32>
    %150 = vector.extract_strided_slice %16 {offsets = [12, 0], sizes = [2, 256], strides = [1, 1]} : vector<16x256xf32> to vector<2x256xf32>
    %151 = arith.truncf %148 : vector<2x64xf32> to vector<2x64xbf16>
    %cst_25 = arith.constant dense<0.000000e+00> : vector<2x256xf32>
    %152 = tpu.matmul %151, %17, %cst_25 {dimension_numbers = #tpu.dot_dimension_numbers<[1], [0], [0], [1], [0, 0, 1, 1], [], []>} : vector<2x64xbf16>, vector<64x256xbf16>, vector<2x256xf32> -> vector<2x256xf32>
    %153 = arith.addf %150, %152 : vector<2x256xf32>
    %154 = math.tanh %153 : vector<2x256xf32>
    %155 = arith.negf %153 : vector<2x256xf32>
    %156 = math.exp %155 : vector<2x256xf32>
    %cst_26 = arith.constant 1.000000e+00 : f32
    %157 = vector.broadcast %cst_26 : f32 to vector<2x256xf32>
    %158 = arith.addf %157, %156 : vector<2x256xf32>
    %159 = arith.divf %157, %158 : vector<2x256xf32>
    %160 = arith.select %20, %154, %159 : vector<2x256xi1>, vector<2x256xf32>
    %161 = vector.extract_strided_slice %160 {offsets = [0, 64], sizes = [2, 64], strides = [1, 1]} : vector<2x256xf32> to vector<2x64xf32>
    %162 = arith.mulf %161, %145 : vector<2x64xf32>
    %163 = vector.extract_strided_slice %160 {offsets = [0, 0], sizes = [2, 64], strides = [1, 1]} : vector<2x256xf32> to vector<2x64xf32>
    %164 = vector.extract_strided_slice %160 {offsets = [0, 192], sizes = [2, 64], strides = [1, 1]} : vector<2x256xf32> to vector<2x64xf32>
    %165 = arith.mulf %163, %164 : vector<2x64xf32>
    %166 = arith.addf %162, %165 : vector<2x64xf32>
    %167 = vector.extract_strided_slice %160 {offsets = [0, 128], sizes = [2, 64], strides = [1, 1]} : vector<2x256xf32> to vector<2x64xf32>
    %168 = math.tanh %166 : vector<2x64xf32>
    %169 = arith.mulf %167, %168 : vector<2x64xf32>
    %170 = arith.maximumf %149, %169 : vector<2x64xf32>
    %171 = vector.extract_strided_slice %16 {offsets = [14, 0], sizes = [2, 256], strides = [1, 1]} : vector<16x256xf32> to vector<2x256xf32>
    %172 = arith.truncf %169 : vector<2x64xf32> to vector<2x64xbf16>
    %cst_27 = arith.constant dense<0.000000e+00> : vector<2x256xf32>
    %173 = tpu.matmul %172, %17, %cst_27 {dimension_numbers = #tpu.dot_dimension_numbers<[1], [0], [0], [1], [0, 0, 1, 1], [], []>} : vector<2x64xbf16>, vector<64x256xbf16>, vector<2x256xf32> -> vector<2x256xf32>
    %174 = arith.addf %171, %173 : vector<2x256xf32>
    %175 = math.tanh %174 : vector<2x256xf32>
    %176 = arith.negf %174 : vector<2x256xf32>
    %177 = math.exp %176 : vector<2x256xf32>
    %cst_28 = arith.constant 1.000000e+00 : f32
    %178 = vector.broadcast %cst_28 : f32 to vector<2x256xf32>
    %179 = arith.addf %178, %177 : vector<2x256xf32>
    %180 = arith.divf %178, %179 : vector<2x256xf32>
    %181 = arith.select %20, %175, %180 : vector<2x256xi1>, vector<2x256xf32>
    %182 = vector.extract_strided_slice %181 {offsets = [0, 64], sizes = [2, 64], strides = [1, 1]} : vector<2x256xf32> to vector<2x64xf32>
    %183 = arith.mulf %182, %166 : vector<2x64xf32>
    %184 = vector.extract_strided_slice %181 {offsets = [0, 0], sizes = [2, 64], strides = [1, 1]} : vector<2x256xf32> to vector<2x64xf32>
    %185 = vector.extract_strided_slice %181 {offsets = [0, 192], sizes = [2, 64], strides = [1, 1]} : vector<2x256xf32> to vector<2x64xf32>
    %186 = arith.mulf %184, %185 : vector<2x64xf32>
    %187 = arith.addf %183, %186 : vector<2x64xf32>
    %188 = vector.extract_strided_slice %181 {offsets = [0, 128], sizes = [2, 64], strides = [1, 1]} : vector<2x256xf32> to vector<2x64xf32>
    %189 = math.tanh %187 : vector<2x64xf32>
    %190 = arith.mulf %188, %189 : vector<2x64xf32>
    %191 = arith.maximumf %170, %190 : vector<2x64xf32>
    %192 = vector.extract_strided_slice %8 {offsets = [0, 0], sizes = [2, 32], strides = [1, 1]} : vector<16x32xf32> to vector<2x32xf32>
    %193 = vector.extract_strided_slice %8 {offsets = [2, 0], sizes = [2, 32], strides = [1, 1]} : vector<16x32xf32> to vector<2x32xf32>
    %194 = arith.maximumf %192, %193 : vector<2x32xf32>
    %195 = vector.extract_strided_slice %8 {offsets = [4, 0], sizes = [2, 32], strides = [1, 1]} : vector<16x32xf32> to vector<2x32xf32>
    %196 = arith.maximumf %194, %195 : vector<2x32xf32>
    %197 = vector.extract_strided_slice %8 {offsets = [6, 0], sizes = [2, 32], strides = [1, 1]} : vector<16x32xf32> to vector<2x32xf32>
    %198 = arith.maximumf %196, %197 : vector<2x32xf32>
    %199 = vector.extract_strided_slice %8 {offsets = [8, 0], sizes = [2, 32], strides = [1, 1]} : vector<16x32xf32> to vector<2x32xf32>
    %200 = arith.maximumf %198, %199 : vector<2x32xf32>
    %201 = vector.extract_strided_slice %8 {offsets = [10, 0], sizes = [2, 32], strides = [1, 1]} : vector<16x32xf32> to vector<2x32xf32>
    %202 = arith.maximumf %200, %201 : vector<2x32xf32>
    %203 = vector.extract_strided_slice %8 {offsets = [12, 0], sizes = [2, 32], strides = [1, 1]} : vector<16x32xf32> to vector<2x32xf32>
    %204 = arith.maximumf %202, %203 : vector<2x32xf32>
    %205 = vector.extract_strided_slice %8 {offsets = [14, 0], sizes = [2, 32], strides = [1, 1]} : vector<16x32xf32> to vector<2x32xf32>
    %206 = arith.maximumf %204, %205 : vector<2x32xf32>
    %cst_29 = arith.constant 0.000000e+00 : f32
    %207 = vector.broadcast %cst_29 : f32 to vector<2x32xf32>
    %208 = arith.maximumf %206, %207 : vector<2x32xf32>
    %209 = tpu.concatenate %208, %191 in 1 : vector<2x32xf32>, vector<2x64xf32> -> vector<2x96xf32>
    %210 = arith.truncf %209 : vector<2x96xf32> to vector<2x96xbf16>
    %c0_30 = arith.constant 0 : index
    %c0_31 = arith.constant 0 : index
    %211 = vector.load %arg5[%c0_30, %c0_31] : memref<96x4xbf16, #tpu.memory_space<vmem>>, vector<96x4xbf16>
    %cst_32 = arith.constant dense<0.000000e+00> : vector<2x4xf32>
    %212 = tpu.matmul %210, %211, %cst_32 {dimension_numbers = #tpu.dot_dimension_numbers<[1], [0], [0], [1], [0, 0, 1, 1], [], []>} : vector<2x96xbf16>, vector<96x4xbf16>, vector<2x4xf32> -> vector<2x4xf32>
    %c0_33 = arith.constant 0 : index
    %c0_34 = arith.constant 0 : index
    %213 = vector.load %arg6[%c0_33, %c0_34] : memref<1x4xf32, #tpu.memory_space<vmem>>, vector<1x4xf32>
    %214 = vector.broadcast %213 : vector<1x4xf32> to vector<2x4xf32>
    %215 = arith.addf %212, %214 : vector<2x4xf32>
    %c0_35 = arith.constant 0 : index
    %c0_36 = arith.constant 0 : index
    %216 = vector.load %arg7[%c0_35, %c0_36] : memref<2x4xf32, #tpu.memory_space<vmem>>, vector<2x4xf32>
    tpu.vector_store %arg7[%c0_35, %c0_36], %215 {strides = array<i32>} : memref<2x4xf32, #tpu.memory_space<vmem>>, vector<2x4xf32>,
    return
  }
}

</mosaic_0001>

<llo_original>
// kernel: textrcnn_forward.1
$region0: #{textrcnn_forward.1}
  #allocation0 [shape = 'u32[]', space=smem, size = 0x4, offset = 0x4, fixed_abs, tag = 'smem constant byte address 0x4 - core index']
  #allocation1 [shape = 'u32[72,128]{1,0:T(1,128)}', space=vmem, size = 0x9000, scoped, tag = 'internal scratch']
  %s0 = inlined_call_operand.vmem [shape: s32[32,1], index: 0, kind: input, shape index: {}]
  %s1 = inlined_call_operand.vmem [shape: f32[50,32], index: 1, kind: input, shape index: {}]
  %s2 = inlined_call_operand.vmem [shape: bf16[64,256], index: 2, kind: input, shape index: {}]
  %s3 = inlined_call_operand.vmem [shape: bf16[64,256], index: 3, kind: input, shape index: {}]
  %s4 = inlined_call_operand.vmem [shape: f32[1,256], index: 4, kind: input, shape index: {}]
  %s5 = inlined_call_operand.vmem [shape: bf16[96,4], index: 5, kind: input, shape index: {}]
  %s6 = inlined_call_operand.vmem [shape: f32[1,4], index: 6, kind: input, shape index: {}]
  %s7 = inlined_call_operand.hbm [shape: f32[2,4], index: 7, kind: output, shape index: {}]
  %s8 = sld [smem:[#allocation0]]
  $region38: #{textrcnn_forward.1} parent=0
    _
  %s10 = ssub.s32 1, %s8
  %s11 = scalar_select 0, %s10, %s8
  $region1: #{textrcnn_forward.1} parent=0
    #allocation2 [shape = 'u8[1024]{0}', space=vmem, size = 0x400, scoped, tag = 'output window, operand 0, single buffered']
    #allocation3 [shape = 's32[1]{0}', space=sflag, size = 0x4, scoped, tag = 'scoped memory for textrcnn_forward.1']
    %12 = vsyncpa [#allocation3], 0
    // Predicated region
    $region2: #{textrcnn_forward.1} parent=1 // pred_check
      _
    $region3: #{textrcnn_forward.1} parent=1 // pred_check_branch
      %14 = sbr.rel (0) target = $region5
    $region4: #{textrcnn_forward.1} parent=1 // pred_region
      _
    $region5: #{textrcnn_forward.1} parent=1 // pred_fallthru
      _
    // Predicated region
    $region6: #{textrcnn_forward.1} parent=1 // pred_check
      _
    $region7: #{textrcnn_forward.1} parent=1 // pred_check_branch
      %16 = sbr.rel (0) target = $region9
    $region8: #{textrcnn_forward.1} parent=1 // pred_region
      _
    $region9: #{textrcnn_forward.1} parent=1 // pred_fallthru
      _
    // Predicated region
    $region10: #{textrcnn_forward.1} parent=1 // pred_check
      _
    $region11: #{textrcnn_forward.1} parent=1 // pred_check_branch
      %18 = sbr.rel (0) target = $region13
    $region12: #{textrcnn_forward.1} parent=1 // pred_region
      _
    $region13: #{textrcnn_forward.1} parent=1 // pred_fallthru
      _
    // Predicated region
    $region14: #{textrcnn_forward.1} parent=1 // pred_check
      _
    $region15: #{textrcnn_forward.1} parent=1 // pred_check_branch
      %20 = sbr.rel (0) target = $region17
    $region16: #{textrcnn_forward.1} parent=1 // pred_region
      _
    $region17: #{textrcnn_forward.1} parent=1 // pred_fallthru
      _
    // Predicated region
    $region18: #{textrcnn_forward.1} parent=1 // pred_check
      _
    $region19: #{textrcnn_forward.1} parent=1 // pred_check_branch
      %22 = sbr.rel (0) target = $region21
    $region20: #{textrcnn_forward.1} parent=1 // pred_region
      _
    $region21: #{textrcnn_forward.1} parent=1 // pred_fallthru
      _
    // Predicated region
    $region22: #{textrcnn_forward.1} parent=1 // pred_check
      _
    $region23: #{textrcnn_forward.1} parent=1 // pred_check_branch
      %24 = sbr.rel (0) target = $region25
    $region24: #{textrcnn_forward.1} parent=1 // pred_region
      _
    $region25: #{textrcnn_forward.1} parent=1 // pred_fallthru
      _
    // Predicated region
    $region26: #{textrcnn_forward.1} parent=1 // pred_check
      _
    $region27: #{textrcnn_forward.1} parent=1 // pred_check_branch
      %26 = sbr.rel (0) target = $region29
    $region28: #{textrcnn_forward.1} parent=1 // pred_region
      _
    $region29: #{textrcnn_forward.1} parent=1 // pred_fallthru
      _
    %v28 = vld [vmem:[%s0] sm:$0xff]
    %v29 = vld [vmem:[%s0 + $0x8] sm:$0xff]
    %v30 = vld [vmem:[%s0 + $0x10] sm:$0xff]
    %v31 = vld [vmem:[%s0 + $0x18] sm:$0xff]
    %v32 = vlaneseq
    %v33 = vand.u32 %v32, 127
    %34 = vset.pattern.permute.xlu0 0
    %35 = vperm.xlu0 %34, %v28
    %v36 = vpop.permute.xlu0 %35
    %37 = vset.pattern.permute.xlu0 0
    %38 = vperm.xlu0 %37, %v29
    %v39 = vpop.permute.xlu0 %38
    %40 = vset.pattern.permute.xlu0 0
    %41 = vperm.xlu0 %40, %v30
    %v42 = vpop.permute.xlu0 %41
    %43 = vset.pattern.permute.xlu0 0
    %44 = vperm.xlu0 %43, %v31
    %v45 = vpop.permute.xlu0 %44
    %vm46 = vcmp.eq.s32.totalorder %v33, %v36
    %vm47 = vcmp.eq.s32.totalorder %v33, %v39
    %vm48 = vcmp.eq.s32.totalorder %v33, %v42
    %vm49 = vcmp.eq.s32.totalorder %v33, %v45
    %v50 = vsel %vm46, 1, 0
    %v51 = vsel %vm47, 1, 0
    %v52 = vsel %vm48, 1, 0
    %v53 = vsel %vm49, 1, 0
    %v54 = vcvt.s32.f32 %v50
    %v55 = vcvt.s32.f32 %v51
    %v56 = vcvt.s32.f32 %v52
    %v57 = vcvt.s32.f32 %v53
    %v58 = vld [vmem:[%s1] sm:$0xff]
    %v59 = vld [vmem:[%s1 + $0x8] sm:$0xff]
    %v60 = vld [vmem:[%s1 + $0x10] sm:$0xff]
    %v61 = vld [vmem:[%s1 + $0x18] sm:$0xff]
    %v62 = vld [vmem:[%s1 + $0x20] sm:$0xff]
    %v63 = vld [vmem:[%s1 + $0x28] sm:$0xff]
    %v64 = vld [vmem:[%s1 + $0x30] sm:$0x3]
    %vm65 = vcmask 408576
    %v67 = vsel %vm65, %v54, 0
    %v70 = vsel %vm65, %v55, 0
    %v73 = vsel %vm65, %v56, 0
    %v76 = vsel %vm65, %v57, 0
    %vm78 = vcmask 1041408
    %v80 = vsel %vm78, %v64, 0
    %82 = vmatpush.msra.mxu0 0.0
    %83 = vmatpush.msra.mxu0 0.0
    %84 = vmatpush.msra.mxu0 0.0
    %85 = vmatpush.msra.mxu0 0.0
    %86 = vmatpush.msra.mxu0 0.0
    %87 = vmatpush.msra.mxu0 0.0
    %88 = vmatpush.msra.mxu0 0.0
    %89 = vmatpush.msra.mxu0 0.0
    %90 = vmatpush.msra.mxu0 0.0
    %91 = vmatpush.msra.mxu0 %v80
    %92 = vmatpush.msra.mxu0 %v63
    %93 = vmatpush.msra.mxu0 %v62
    %94 = vmatpush.msra.mxu0 %v61
    %95 = vmatpush.msra.mxu0 %v60
    %96 = vmatpush.msra.mxu0 %v59
    %97 = vmatpush.msra.mxu0 %v58
    %98 = vmatmul.f32.gmra.mxu0 %v67
    %v99 = vpop.f32.mrf.mxu0
    %v100 = vadd.f32 0.0, %v99
    %101 = vmatmul.f32.gmra.mxu0 %v70
    %v102 = vpop.f32.mrf.mxu0
    %v103 = vadd.f32 0.0, %v102
    %104 = vmatmul.f32.gmra.mxu0 %v73
    %v105 = vpop.f32.mrf.mxu0
    %v106 = vadd.f32 0.0, %v105
    %107 = vmatmul.f32.gmra.mxu0 %v76
    %v108 = vpop.f32.mrf.mxu0
    %v109 = vadd.f32 0.0, %v108
    %110 = vdwg.mxu0
    %113 = vrot.lane.b32.xlu0 %v106, 32
    %v114 = vpop.permute.xlu0 %113
    %115 = vrot.lane.b32.xlu0 %v109, 32
    %v116 = vpop.permute.xlu0 %115
    %vm119 = vcmask 261120
    %v120 = vsel %vm119, %v100, %v114
    %v121 = vsel %vm119, %v103, %v116
    %v122 = vpack.c.bf16 %v121, %v120
    %v123 = vld [vmem:[%s2] sm:$0xff]
    %v124 = vld [vmem:[%s2 + $0x8] sm:$0xff]
    %v125 = vld [vmem:[%s2 + $0x10] sm:$0xff]
    %v126 = vld [vmem:[%s2 + $0x18] sm:$0xff]
    %v127 = vld [vmem:[%s2 + $0x20] sm:$0xff]
    %v128 = vld [vmem:[%s2 + $0x28] sm:$0xff]
    %v129 = vld [vmem:[%s2 + $0x30] sm:$0xff]
    %v130 = vld [vmem:[%s2 + $0x38] sm:$0xff]
    %v131 = vld [vmem:[%s4] sm:$0x3]
    %v133 = vperm.slane %v131, 0
    %v134 = vperm.slane %v131, 1
    %v145 = vunpack.c.l.b16 %v123
    %v146 = vunpack.c.h.b16 %v123
    %v147 = vunpack.c.l.b16 %v124
    %v148 = vunpack.c.h.b16 %v124
    %v149 = vunpack.c.l.b16 %v125
    %v150 = vunpack.c.h.b16 %v125
    %v151 = vunpack.c.l.b16 %v126
    %v152 = vunpack.c.h.b16 %v126
    %v153 = vunpack.c.l.b16 %v127
    %v154 = vunpack.c.h.b16 %v127
    %v155 = vunpack.c.l.b16 %v128
    %v156 = vunpack.c.h.b16 %v128
    %v157 = vunpack.c.l.b16 %v129
    %v158 = vunpack.c.h.b16 %v129
    %v159 = vunpack.c.l.b16 %v130
    %v160 = vunpack.c.h.b16 %v130
    %v161 = vpack.c.b16 %v147, %v145
    %v162 = vpack.c.b16 %v148, %v146
    %v163 = vpack.c.b16 %v151, %v149
    %v164 = vpack.c.b16 %v152, %v150
    %v165 = vpack.c.b16 %v155, %v153
    %v166 = vpack.c.b16 %v156, %v154
    %v167 = vpack.c.b16 %v159, %v157
    %v168 = vpack.c.b16 %v160, %v158
    %vm177 = vcmask 523264
    %v179 = vsel %vm177, %v122, 0
    %181 = vmatpush.bf16.msra.mxu0 0
    %182 = vmatpush.bf16.msra.mxu0 0
    %183 = vmatpush.bf16.msra.mxu0 0
    %184 = vmatpush.bf16.msra.mxu0 0
    %185 = vmatpush.bf16.msra.mxu0 %v167
    %186 = vmatpush.bf16.msra.mxu0 %v165
    %187 = vmatpush.bf16.msra.mxu0 %v163
    %188 = vmatpush.bf16.msra.mxu0 %v161
    %189 = vmatmul.bf16.gmra.mxu0 %v179
    %v190 = vpop.f32.mrf.mxu0
    %v191 = vadd.f32 %v133, %v190
    %v192 = vpop.f32.mrf.mxu0
    %v193 = vadd.f32 %v133, %v192
    %194 = vdwg.mxu0
    %195 = vmatpush.bf16.msra.mxu0 0
    %196 = vmatpush.bf16.msra.mxu0 0
    %197 = vmatpush.bf16.msra.mxu0 0
    %198 = vmatpush.bf16.msra.mxu0 0
    %199 = vmatpush.bf16.msra.mxu0 %v168
    %200 = vmatpush.bf16.msra.mxu0 %v166
    %201 = vmatpush.bf16.msra.mxu0 %v164
    %202 = vmatpush.bf16.msra.mxu0 %v162
    %203 = vmatmul.bf16.gmra.mxu0 %v179
    %v204 = vpop.f32.mrf.mxu0
    %v205 = vadd.f32 %v134, %v204
    %v206 = vpop.f32.mrf.mxu0
    %v207 = vadd.f32 %v134, %v206
    %208 = vdwg.mxu0
    %v209 = vld [vmem:[%s3] sm:$0xff]
    %v210 = vld [vmem:[%s3 + $0x8] sm:$0xff]
    %v211 = vld [vmem:[%s3 + $0x10] sm:$0xff]
    %v212 = vld [vmem:[%s3 + $0x18] sm:$0xff]
    %v213 = vld [vmem:[%s3 + $0x20] sm:$0xff]
    %v214 = vld [vmem:[%s3 + $0x28] sm:$0xff]
    %v215 = vld [vmem:[%s3 + $0x30] sm:$0xff]
    %v216 = vld [vmem:[%s3 + $0x38] sm:$0xff]
    %v217 = vadd.s32 %v33, 128
    %vm218 = vcmp.ge.s32.totalorder %v33, 192
    %vm219 = vcmp.ge.s32.totalorder %v217, 192
    %v228 = vunpack.c.l.b16 %v209
    %v229 = vunpack.c.h.b16 %v209
    %v230 = vunpack.c.l.b16 %v210
    %v231 = vunpack.c.h.b16 %v210
    %v232 = vunpack.c.l.b16 %v211
    %v233 = vunpack.c.h.b16 %v211
    %v234 = vunpack.c.l.b16 %v212
    %v235 = vunpack.c.h.b16 %v212
    %v236 = vunpack.c.l.b16 %v213
    %v237 = vunpack.c.h.b16 %v213
    %v238 = vunpack.c.l.b16 %v214
    %v239 = vunpack.c.h.b16 %v214
    %v240 = vunpack.c.l.b16 %v215
    %v241 = vunpack.c.h.b16 %v215
    %v242 = vunpack.c.l.b16 %v216
    %v243 = vunpack.c.h.b16 %v216
    %v244 = vpack.c.b16 %v230, %v228
    %v245 = vpack.c.b16 %v231, %v229
    %v246 = vpack.c.b16 %v234, %v232
    %v247 = vpack.c.b16 %v235, %v233
    %v248 = vpack.c.b16 %v238, %v236
    %v249 = vpack.c.b16 %v239, %v237
    %v250 = vpack.c.b16 %v242, %v240
    %v251 = vpack.c.b16 %v243, %v241
    %v261 = vsel %vm177, 0, 0
    %263 = vmatpush.bf16.msra.mxu0 0
    %264 = vmatpush.bf16.msra.mxu0 0
    %265 = vmatpush.bf16.msra.mxu0 0
    %266 = vmatpush.bf16.msra.mxu0 0
    %267 = vmatpush.bf16.msra.mxu0 %v250
    %268 = vmatpush.bf16.msra.mxu0 %v248
    %269 = vmatpush.bf16.msra.mxu0 %v246
    %270 = vmatpush.bf16.msra.mxu0 %v244
    %271 = vmatmul.bf16.gmra.mxu0 %v261
    %v272 = vpop.f32.mrf.mxu0
    %v273 = vadd.f32 0.0, %v272
    %v274 = vpop.f32.mrf.mxu0
    %275 = vdwg.mxu0
    %276 = vmatpush.bf16.msra.mxu0 0
    %277 = vmatpush.bf16.msra.mxu0 0
    %278 = vmatpush.bf16.msra.mxu0 0
    %279 = vmatpush.bf16.msra.mxu0 0
    %280 = vmatpush.bf16.msra.mxu0 %v251
    %281 = vmatpush.bf16.msra.mxu0 %v249
    %282 = vmatpush.bf16.msra.mxu0 %v247
    %283 = vmatpush.bf16.msra.mxu0 %v245
    %284 = vmatmul.bf16.gmra.mxu0 %v261
    %v285 = vpop.f32.mrf.mxu0
    %v286 = vadd.f32 0.0, %v285
    %v287 = vpop.f32.mrf.mxu0
    %288 = vdwg.mxu0
    %v289 = vadd.f32 %v191, %v273
    %v290 = vadd.f32 %v205, %v286
    %v291 = vtanh.pop %v289
    %v292 = vtanh.pop %v290
    %v293 = vxor.u32 %v289, 2147483648
    %v294 = vxor.u32 %v290, 2147483648
    %v295 = vmul.f32 %v293, 1.442695
    %v296 = vpow.pop %v295
    %v297 = vmul.f32 %v294, 1.442695
    %v298 = vpow.pop %v297
    %v299 = vadd.f32 %v296, 1.0
    %v300 = vadd.f32 %v298, 1.0
    %v301 = vrcp.pop %v299
    %v302 = vmul.f32 %v299, %v301
    %v303 = vsub.f32 1.0, %v302
    %v304 = vmul.f32 %v301, %v303
    %v305 = vadd.f32 %v301, %v304
    %vm306 = vweird.f32 %v299
    %vm307 = vweird.f32 %v301
    %vm308 = vmor %vm306, %vm307
    %v309 = vsel %vm308, %v301, %v305
    %v310 = vand.u32 2147483647, %v299
    %vm311 = vcmp.eq.f32.partialorder %v310, 8.507059e+37
    %v312 = vand.u32 %v299, 2147483648
    %v313 = vor.u32 1.1754944e-38, %v312
    %v314 = vsel %vm311, %v313, %v309
    %v315 = vmul.f32 1.0, %v314
    %v316 = vrcp.pop %v300
    %v317 = vmul.f32 %v300, %v316
    %v318 = vsub.f32 1.0, %v317
    %v319 = vmul.f32 %v316, %v318
    %v320 = vadd.f32 %v316, %v319
    %vm321 = vweird.f32 %v300
    %vm322 = vweird.f32 %v316
    %vm323 = vmor %vm321, %vm322
    %v324 = vsel %vm323, %v316, %v320
    %v325 = vand.u32 2147483647, %v300
    %vm326 = vcmp.eq.f32.partialorder %v325, 8.507059e+37
    %v327 = vand.u32 %v300, 2147483648
    %v328 = vor.u32 1.1754944e-38, %v327
    %v329 = vsel %vm326, %v328, %v324
    %v330 = vmul.f32 1.0, %v329
    %v331 = vsel %vm218, %v291, %v315
    %v332 = vsel %vm219, %v292, %v330
    %v333 = vmul.f32 %v331, 0.0
    %335 = vrot.lane.b32.xlu0 %v332, 64
    %v336 = vpop.permute.xlu0 %335
    %v338 = vmul.f32 %v331, %v336
    %340 = vrot.lane.b32.xlu0 %v338, 64
    %v341 = vpop.permute.xlu0 %340
    %v343 = vadd.f32 %v333, %v341
    %v344 = vtanh.pop %v343
    %346 = vrot.lane.b32.xlu0 %v344, 64
    %v347 = vpop.permute.xlu0 %346
    %v349 = vmul.f32 %v332, %v347
    %v350 = vmax.f32 %v349, 0.0
    %v351 = vpack.c.bf16 %v349, %v349
    %v353 = vsel %vm177, %v351, 0
    %355 = vmatpush.bf16.msra.mxu0 0
    %356 = vmatpush.bf16.msra.mxu0 0
    %357 = vmatpush.bf16.msra.mxu0 0
    %358 = vmatpush.bf16.msra.mxu0 0
    %359 = vmatpush.bf16.msra.mxu0 %v250
    %360 = vmatpush.bf16.msra.mxu0 %v248
    %361 = vmatpush.bf16.msra.mxu0 %v246
    %362 = vmatpush.bf16.msra.mxu0 %v244
    %363 = vmatmul.bf16.gmra.mxu0 %v353
    %v364 = vpop.f32.mrf.mxu0
    %v365 = vadd.f32 0.0, %v364
    %v366 = vpop.f32.mrf.mxu0
    %367 = vdwg.mxu0
    %368 = vmatpush.bf16.msra.mxu0 0
    %369 = vmatpush.bf16.msra.mxu0 0
    %370 = vmatpush.bf16.msra.mxu0 0
    %371 = vmatpush.bf16.msra.mxu0 0
    %372 = vmatpush.bf16.msra.mxu0 %v251
    %373 = vmatpush.bf16.msra.mxu0 %v249
    %374 = vmatpush.bf16.msra.mxu0 %v247
    %375 = vmatpush.bf16.msra.mxu0 %v245
    %376 = vmatmul.bf16.gmra.mxu0 %v353
    %v377 = vpop.f32.mrf.mxu0
    %v378 = vadd.f32 0.0, %v377
    %v379 = vpop.f32.mrf.mxu0
    %380 = vdwg.mxu0
    %v383 = vrot.slane %v365, 6
    %v384 = vrot.slane %v378, 6
    %v387 = vadd.f32 %v191, %v383
    %v388 = vadd.f32 %v205, %v384
    %v389 = vtanh.pop %v387
    %v390 = vtanh.pop %v388
    %v391 = vxor.u32 %v387, 2147483648
    %v392 = vxor.u32 %v388, 2147483648
    %v393 = vmul.f32 %v391, 1.442695
    %v394 = vpow.pop %v393
    %v395 = vmul.f32 %v392, 1.442695
    %v396 = vpow.pop %v395
    %v397 = vadd.f32 %v394, 1.0
    %v398 = vadd.f32 %v396, 1.0
    %v399 = vrcp.pop %v397
    %v400 = vmul.f32 %v397, %v399
    %v401 = vsub.f32 1.0, %v400
    %v402 = vmul.f32 %v399, %v401
    %v403 = vadd.f32 %v399, %v402
    %vm404 = vweird.f32 %v397
    %vm405 = vweird.f32 %v399
    %vm406 = vmor %vm404, %vm405
    %v407 = vsel %vm406, %v399, %v403
    %v408 = vand.u32 2147483647, %v397
    %vm409 = vcmp.eq.f32.partialorder %v408, 8.507059e+37
    %v410 = vand.u32 %v397, 2147483648
    %v411 = vor.u32 1.1754944e-38, %v410
    %v412 = vsel %vm409, %v411, %v407
    %v413 = vmul.f32 1.0, %v412
    %v414 = vrcp.pop %v398
    %v415 = vmul.f32 %v398, %v414
    %v416 = vsub.f32 1.0, %v415
    %v417 = vmul.f32 %v414, %v416
    %v418 = vadd.f32 %v414, %v417
    %vm419 = vweird.f32 %v398
    %vm420 = vweird.f32 %v414
    %vm421 = vmor %vm419, %vm420
    %v422 = vsel %vm421, %v414, %v418
    %v423 = vand.u32 2147483647, %v398
    %vm424 = vcmp.eq.f32.partialorder %v423, 8.507059e+37
    %v425 = vand.u32 %v398, 2147483648
    %v426 = vor.u32 1.1754944e-38, %v425
    %v427 = vsel %vm424, %v426, %v422
    %v428 = vmul.f32 1.0, %v427
    %v429 = vsel %vm218, %v389, %v413
    %v430 = vsel %vm219, %v390, %v428
    %v432 = vrot.slane %v343, 6
    %v434 = vmul.f32 %v429, %v432
    %436 = vrot.lane.b32.xlu0 %v430, 64
    %v437 = vpop.permute.xlu0 %436
    %v439 = vmul.f32 %v429, %v437
    %441 = vrot.lane.b32.xlu0 %v439, 64
    %v442 = vpop.permute.xlu0 %441
    %v444 = vadd.f32 %v434, %v442
    %v445 = vtanh.pop %v444
    %447 = vrot.lane.b32.xlu0 %v445, 64
    %v448 = vpop.permute.xlu0 %447
    %v450 = vmul.f32 %v430, %v448
    %v452 = vrot.slane %v450, 2
    %v454 = vmax.f32 %v350, %v452
    %v455 = vpack.c.bf16 %v450, %v450
    %v457 = vrot.slane %v455, 1
    %v459 = vsel %vm177, %v457, 0
    %461 = vmatpush.bf16.msra.mxu0 0
    %462 = vmatpush.bf16.msra.mxu0 0
    %463 = vmatpush.bf16.msra.mxu0 0
    %464 = vmatpush.bf16.msra.mxu0 0
    %465 = vmatpush.bf16.msra.mxu0 %v250
    %466 = vmatpush.bf16.msra.mxu0 %v248
    %467 = vmatpush.bf16.msra.mxu0 %v246
    %468 = vmatpush.bf16.msra.mxu0 %v244
    %469 = vmatmul.bf16.gmra.mxu0 %v459
    %v470 = vpop.f32.mrf.mxu0
    %v471 = vadd.f32 0.0, %v470
    %v472 = vpop.f32.mrf.mxu0
    %473 = vdwg.mxu0
    %474 = vmatpush.bf16.msra.mxu0 0
    %475 = vmatpush.bf16.msra.mxu0 0
    %476 = vmatpush.bf16.msra.mxu0 0
    %477 = vmatpush.bf16.msra.mxu0 0
    %478 = vmatpush.bf16.msra.mxu0 %v251
    %479 = vmatpush.bf16.msra.mxu0 %v249
    %480 = vmatpush.bf16.msra.mxu0 %v247
    %481 = vmatpush.bf16.msra.mxu0 %v245
    %482 = vmatmul.bf16.gmra.mxu0 %v459
    %v483 = vpop.f32.mrf.mxu0
    %v484 = vadd.f32 0.0, %v483
    %v485 = vpop.f32.mrf.mxu0
    %486 = vdwg.mxu0
    %v489 = vrot.slane %v471, 4
    %v490 = vrot.slane %v484, 4
    %v493 = vadd.f32 %v191, %v489
    %v494 = vadd.f32 %v205, %v490
    %v495 = vtanh.pop %v493
    %v496 = vtanh.pop %v494
    %v497 = vxor.u32 %v493, 2147483648
    %v498 = vxor.u32 %v494, 2147483648
    %v499 = vmul.f32 %v497, 1.442695
    %v500 = vpow.pop %v499
    %v501 = vmul.f32 %v498, 1.442695
    %v502 = vpow.pop %v501
    %v503 = vadd.f32 %v500, 1.0
    %v504 = vadd.f32 %v502, 1.0
    %v505 = vrcp.pop %v503
    %v506 = vmul.f32 %v503, %v505
    %v507 = vsub.f32 1.0, %v506
    %v508 = vmul.f32 %v505, %v507
    %v509 = vadd.f32 %v505, %v508
    %vm510 = vweird.f32 %v503
    %vm511 = vweird.f32 %v505
    %vm512 = vmor %vm510, %vm511
    %v513 = vsel %vm512, %v505, %v509
    %v514 = vand.u32 2147483647, %v503
    %vm515 = vcmp.eq.f32.partialorder %v514, 8.507059e+37
    %v516 = vand.u32 %v503, 2147483648
    %v517 = vor.u32 1.1754944e-38, %v516
    %v518 = vsel %vm515, %v517, %v513
    %v519 = vmul.f32 1.0, %v518
    %v520 = vrcp.pop %v504
    %v521 = vmul.f32 %v504, %v520
    %v522 = vsub.f32 1.0, %v521
    %v523 = vmul.f32 %v520, %v522
    %v524 = vadd.f32 %v520, %v523
    %vm525 = vweird.f32 %v504
    %vm526 = vweird.f32 %v520
    %vm527 = vmor %vm525, %vm526
    %v528 = vsel %vm527, %v520, %v524
    %v529 = vand.u32 2147483647, %v504
    %vm530 = vcmp.eq.f32.partialorder %v529, 8.507059e+37
    %v531 = vand.u32 %v504, 2147483648
    %v532 = vor.u32 1.1754944e-38, %v531
    %v533 = vsel %vm530, %v532, %v528
    %v534 = vmul.f32 1.0, %v533
    %v535 = vsel %vm218, %v495, %v519
    %v536 = vsel %vm219, %v496, %v534
    %v538 = vrot.slane %v444, 6
    %v540 = vmul.f32 %v535, %v538
    %542 = vrot.lane.b32.xlu0 %v536, 64
    %v543 = vpop.permute.xlu0 %542
    %v545 = vmul.f32 %v535, %v543
    %547 = vrot.lane.b32.xlu0 %v545, 64
    %v548 = vpop.permute.xlu0 %547
    %v550 = vadd.f32 %v540, %v548
    %v551 = vtanh.pop %v550
    %553 = vrot.lane.b32.xlu0 %v551, 64
    %v554 = vpop.permute.xlu0 %553
    %v556 = vmul.f32 %v536, %v554
    %v558 = vrot.slane %v556, 4
    %v560 = vmax.f32 %v454, %v558
    %v561 = vpack.c.bf16 %v556, %v556
    %v563 = vrot.slane %v561, 2
    %v565 = vsel %vm177, %v563, 0
    %567 = vmatpush.bf16.msra.mxu0 0
    %568 = vmatpush.bf16.msra.mxu0 0
    %569 = vmatpush.bf16.msra.mxu0 0
    %570 = vmatpush.bf16.msra.mxu0 0
    %571 = vmatpush.bf16.msra.mxu0 %v250
    %572 = vmatpush.bf16.msra.mxu0 %v248
    %573 = vmatpush.bf16.msra.mxu0 %v246
    %574 = vmatpush.bf16.msra.mxu0 %v244
    %575 = vmatmul.bf16.gmra.mxu0 %v565
    %v576 = vpop.f32.mrf.mxu0
    %v577 = vadd.f32 0.0, %v576
    %v578 = vpop.f32.mrf.mxu0
    %579 = vdwg.mxu0
    %580 = vmatpush.bf16.msra.mxu0 0
    %581 = vmatpush.bf16.msra.mxu0 0
    %582 = vmatpush.bf16.msra.mxu0 0
    %583 = vmatpush.bf16.msra.mxu0 0
    %584 = vmatpush.bf16.msra.mxu0 %v251
    %585 = vmatpush.bf16.msra.mxu0 %v249
    %586 = vmatpush.bf16.msra.mxu0 %v247
    %587 = vmatpush.bf16.msra.mxu0 %v245
    %588 = vmatmul.bf16.gmra.mxu0 %v565
    %v589 = vpop.f32.mrf.mxu0
    %v590 = vadd.f32 0.0, %v589
    %v591 = vpop.f32.mrf.mxu0
    %592 = vdwg.mxu0
    %v595 = vrot.slane %v577, 2
    %v596 = vrot.slane %v590, 2
    %v599 = vadd.f32 %v191, %v595
    %v600 = vadd.f32 %v205, %v596
    %v601 = vtanh.pop %v599
    %v602 = vtanh.pop %v600
    %v603 = vxor.u32 %v599, 2147483648
    %v604 = vxor.u32 %v600, 2147483648
    %v605 = vmul.f32 %v603, 1.442695
    %v606 = vpow.pop %v605
    %v607 = vmul.f32 %v604, 1.442695
    %v608 = vpow.pop %v607
    %v609 = vadd.f32 %v606, 1.0
    %v610 = vadd.f32 %v608, 1.0
    %v611 = vrcp.pop %v609
    %v612 = vmul.f32 %v609, %v611
    %v613 = vsub.f32 1.0, %v612
    %v614 = vmul.f32 %v611, %v613
    %v615 = vadd.f32 %v611, %v614
    %vm616 = vweird.f32 %v609
    %vm617 = vweird.f32 %v611
    %vm618 = vmor %vm616, %vm617
    %v619 = vsel %vm618, %v611, %v615
    %v620 = vand.u32 2147483647, %v609
    %vm621 = vcmp.eq.f32.partialorder %v620, 8.507059e+37
    %v622 = vand.u32 %v609, 2147483648
    %v623 = vor.u32 1.1754944e-38, %v622
    %v624 = vsel %vm621, %v623, %v619
    %v625 = vmul.f32 1.0, %v624
    %v626 = vrcp.pop %v610
    %v627 = vmul.f32 %v610, %v626
    %v628 = vsub.f32 1.0, %v627
    %v629 = vmul.f32 %v626, %v628
    %v630 = vadd.f32 %v626, %v629
    %vm631 = vweird.f32 %v610
    %vm632 = vweird.f32 %v626
    %vm633 = vmor %vm631, %vm632
    %v634 = vsel %vm633, %v626, %v630
    %v635 = vand.u32 2147483647, %v610
    %vm636 = vcmp.eq.f32.partialorder %v635, 8.507059e+37
    %v637 = vand.u32 %v610, 2147483648
    %v638 = vor.u32 1.1754944e-38, %v637
    %v639 = vsel %vm636, %v638, %v634
    %v640 = vmul.f32 1.0, %v639
    %v641 = vsel %vm218, %v601, %v625
    %v642 = vsel %vm219, %v602, %v640
    %v644 = vrot.slane %v550, 6
    %v646 = vmul.f32 %v641, %v644
    %648 = vrot.lane.b32.xlu0 %v642, 64
    %v649 = vpop.permute.xlu0 %648
    %v651 = vmul.f32 %v641, %v649
    %653 = vrot.lane.b32.xlu0 %v651, 64
    %v654 = vpop.permute.xlu0 %653
    %v656 = vadd.f32 %v646, %v654
    %v657 = vtanh.pop %v656
    %659 = vrot.lane.b32.xlu0 %v657, 64
    %v660 = vpop.permute.xlu0 %659
    %v662 = vmul.f32 %v642, %v660
    %v664 = vrot.slane %v662, 6
    %v666 = vmax.f32 %v560, %v664
    %v667 = vpack.c.bf16 %v662, %v662
    %v669 = vrot.slane %v667, 3
    %v671 = vsel %vm177, %v669, 0
    %673 = vmatpush.bf16.msra.mxu0 0
    %674 = vmatpush.bf16.msra.mxu0 0
    %675 = vmatpush.bf16.msra.mxu0 0
    %676 = vmatpush.bf16.msra.mxu0 0
    %677 = vmatpush.bf16.msra.mxu0 %v250
    %678 = vmatpush.bf16.msra.mxu0 %v248
    %679 = vmatpush.bf16.msra.mxu0 %v246
    %680 = vmatpush.bf16.msra.mxu0 %v244
    %681 = vmatmul.bf16.gmra.mxu0 %v671
    %v682 = vpop.f32.mrf.mxu0
    %v683 = vadd.f32 0.0, %v682
    %v684 = vpop.f32.mrf.mxu0
    %685 = vdwg.mxu0
    %686 = vmatpush.bf16.msra.mxu0 0
    %687 = vmatpush.bf16.msra.mxu0 0
    %688 = vmatpush.bf16.msra.mxu0 0
    %689 = vmatpush.bf16.msra.mxu0 0
    %690 = vmatpush.bf16.msra.mxu0 %v251
    %691 = vmatpush.bf16.msra.mxu0 %v249
    %692 = vmatpush.bf16.msra.mxu0 %v247
    %693 = vmatpush.bf16.msra.mxu0 %v245
    %694 = vmatmul.bf16.gmra.mxu0 %v671
    %v695 = vpop.f32.mrf.mxu0
    %v696 = vadd.f32 0.0, %v695
    %v697 = vpop.f32.mrf.mxu0
    %698 = vdwg.mxu0
    %v699 = vadd.f32 %v193, %v683
    %v700 = vadd.f32 %v207, %v696
    %v701 = vtanh.pop %v699
    %v702 = vtanh.pop %v700
    %v703 = vxor.u32 %v699, 2147483648
    %v704 = vxor.u32 %v700, 2147483648
    %v705 = vmul.f32 %v703, 1.442695
    %v706 = vpow.pop %v705
    %v707 = vmul.f32 %v704, 1.442695
    %v708 = vpow.pop %v707
    %v709 = vadd.f32 %v706, 1.0
    %v710 = vadd.f32 %v708, 1.0
    %v711 = vrcp.pop %v709
    %v712 = vmul.f32 %v709, %v711
    %v713 = vsub.f32 1.0, %v712
    %v714 = vmul.f32 %v711, %v713
    %v715 = vadd.f32 %v711, %v714
    %vm716 = vweird.f32 %v709
    %vm717 = vweird.f32 %v711
    %vm718 = vmor %vm716, %vm717
    %v719 = vsel %vm718, %v711, %v715
    %v720 = vand.u32 2147483647, %v709
    %vm721 = vcmp.eq.f32.partialorder %v720, 8.507059e+37
    %v722 = vand.u32 %v709, 2147483648
    %v723 = vor.u32 1.1754944e-38, %v722
    %v724 = vsel %vm721, %v723, %v719
    %v725 = vmul.f32 1.0, %v724
    %v726 = vrcp.pop %v710
    %v727 = vmul.f32 %v710, %v726
    %v728 = vsub.f32 1.0, %v727
    %v729 = vmul.f32 %v726, %v728
    %v730 = vadd.f32 %v726, %v729
    %vm731 = vweird.f32 %v710
    %vm732 = vweird.f32 %v726
    %vm733 = vmor %vm731, %vm732
    %v734 = vsel %vm733, %v726, %v730
    %v735 = vand.u32 2147483647, %v710
    %vm736 = vcmp.eq.f32.partialorder %v735, 8.507059e+37
    %v737 = vand.u32 %v710, 2147483648
    %v738 = vor.u32 1.1754944e-38, %v737
    %v739 = vsel %vm736, %v738, %v734
    %v740 = vmul.f32 1.0, %v739
    %v741 = vsel %vm218, %v701, %v725
    %v742 = vsel %vm219, %v702, %v740
    %v744 = vrot.slane %v656, 6
    %v746 = vmul.f32 %v741, %v744
    %748 = vrot.lane.b32.xlu0 %v742, 64
    %v749 = vpop.permute.xlu0 %748
    %v751 = vmul.f32 %v741, %v749
    %753 = vrot.lane.b32.xlu0 %v751, 64
    %v754 = vpop.permute.xlu0 %753
    %v756 = vadd.f32 %v746, %v754
    %v757 = vtanh.pop %v756
    %759 = vrot.lane.b32.xlu0 %v757, 64
    %v760 = vpop.permute.xlu0 %759
    %v762 = vmul.f32 %v742, %v760
    %v763 = vmax.f32 %v666, %v762
    %v764 = vpack.c.bf16 %v762, %v762
    %v766 = vsel %vm177, %v764, 0
    %768 = vmatpush.bf16.msra.mxu0 0
    %769 = vmatpush.bf16.msra.mxu0 0
    %770 = vmatpush.bf16.msra.mxu0 0
    %771 = vmatpush.bf16.msra.mxu0 0
    %772 = vmatpush.bf16.msra.mxu0 %v250
    %773 = vmatpush.bf16.msra.mxu0 %v248
    %774 = vmatpush.bf16.msra.mxu0 %v246
    %775 = vmatpush.bf16.msra.mxu0 %v244
    %776 = vmatmul.bf16.gmra.mxu0 %v766
    %v777 = vpop.f32.mrf.mxu0
    %v778 = vadd.f32 0.0, %v777
    %v779 = vpop.f32.mrf.mxu0
    %780 = vdwg.mxu0
    %781 = vmatpush.bf16.msra.mxu0 0
    %782 = vmatpush.bf16.msra.mxu0 0
    %783 = vmatpush.bf16.msra.mxu0 0
    %784 = vmatpush.bf16.msra.mxu0 0
    %785 = vmatpush.bf16.msra.mxu0 %v251
    %786 = vmatpush.bf16.msra.mxu0 %v249
    %787 = vmatpush.bf16.msra.mxu0 %v247
    %788 = vmatpush.bf16.msra.mxu0 %v245
    %789 = vmatmul.bf16.gmra.mxu0 %v766
    %v790 = vpop.f32.mrf.mxu0
    %v791 = vadd.f32 0.0, %v790
    %v792 = vpop.f32.mrf.mxu0
    %793 = vdwg.mxu0
    %v796 = vrot.slane %v778, 6
    %v797 = vrot.slane %v791, 6
    %v800 = vadd.f32 %v193, %v796
    %v801 = vadd.f32 %v207, %v797
    %v802 = vtanh.pop %v800
    %v803 = vtanh.pop %v801
    %v804 = vxor.u32 %v800, 2147483648
    %v805 = vxor.u32 %v801, 2147483648
    %v806 = vmul.f32 %v804, 1.442695
    %v807 = vpow.pop %v806
    %v808 = vmul.f32 %v805, 1.442695
    %v809 = vpow.pop %v808
    %v810 = vadd.f32 %v807, 1.0
    %v811 = vadd.f32 %v809, 1.0
    %v812 = vrcp.pop %v810
    %v813 = vmul.f32 %v810, %v812
    %v814 = vsub.f32 1.0, %v813
    %v815 = vmul.f32 %v812, %v814
    %v816 = vadd.f32 %v812, %v815
    %vm817 = vweird.f32 %v810
    %vm818 = vweird.f32 %v812
    %vm819 = vmor %vm817, %vm818
    %v820 = vsel %vm819, %v812, %v816
    %v821 = vand.u32 2147483647, %v810
    %vm822 = vcmp.eq.f32.partialorder %v821, 8.507059e+37
    %v823 = vand.u32 %v810, 2147483648
    %v824 = vor.u32 1.1754944e-38, %v823
    %v825 = vsel %vm822, %v824, %v820
    %v826 = vmul.f32 1.0, %v825
    %v827 = vrcp.pop %v811
    %v828 = vmul.f32 %v811, %v827
    %v829 = vsub.f32 1.0, %v828
    %v830 = vmul.f32 %v827, %v829
    %v831 = vadd.f32 %v827, %v830
    %vm832 = vweird.f32 %v811
    %vm833 = vweird.f32 %v827
    %vm834 = vmor %vm832, %vm833
    %v835 = vsel %vm834, %v827, %v831
    %v836 = vand.u32 2147483647, %v811
    %vm837 = vcmp.eq.f32.partialorder %v836, 8.507059e+37
    %v838 = vand.u32 %v811, 2147483648
    %v839 = vor.u32 1.1754944e-38, %v838
    %v840 = vsel %vm837, %v839, %v835
    %v841 = vmul.f32 1.0, %v840
    %v842 = vsel %vm218, %v802, %v826
    %v843 = vsel %vm219, %v803, %v841
    %v845 = vrot.slane %v756, 6
    %v847 = vmul.f32 %v842, %v845
    %849 = vrot.lane.b32.xlu0 %v843, 64
    %v850 = vpop.permute.xlu0 %849
    %v852 = vmul.f32 %v842, %v850
    %854 = vrot.lane.b32.xlu0 %v852, 64
    %v855 = vpop.permute.xlu0 %854
    %v857 = vadd.f32 %v847, %v855
    %v858 = vtanh.pop %v857
    %860 = vrot.lane.b32.xlu0 %v858, 64
    %v861 = vpop.permute.xlu0 %860
    %v863 = vmul.f32 %v843, %v861
    %v865 = vrot.slane %v863, 2
    %v867 = vmax.f32 %v763, %v865
    %v868 = vpack.c.bf16 %v863, %v863
    %v870 = vrot.slane %v868, 1
    %v872 = vsel %vm177, %v870, 0
    %874 = vmatpush.bf16.msra.mxu0 0
    %875 = vmatpush.bf16.msra.mxu0 0
    %876 = vmatpush.bf16.msra.mxu0 0
    %877 = vmatpush.bf16.msra.mxu0 0
    %878 = vmatpush.bf16.msra.mxu0 %v250
    %879 = vmatpush.bf16.msra.mxu0 %v248
    %880 = vmatpush.bf16.msra.mxu0 %v246
    %881 = vmatpush.bf16.msra.mxu0 %v244
    %882 = vmatmul.bf16.gmra.mxu0 %v872
    %v883 = vpop.f32.mrf.mxu0
    %v884 = vadd.f32 0.0, %v883
    %v885 = vpop.f32.mrf.mxu0
    %886 = vdwg.mxu0
    %887 = vmatpush.bf16.msra.mxu0 0
    %888 = vmatpush.bf16.msra.mxu0 0
    %889 = vmatpush.bf16.msra.mxu0 0
    %890 = vmatpush.bf16.msra.mxu0 0
    %891 = vmatpush.bf16.msra.mxu0 %v251
    %892 = vmatpush.bf16.msra.mxu0 %v249
    %893 = vmatpush.bf16.msra.mxu0 %v247
    %894 = vmatpush.bf16.msra.mxu0 %v245
    %895 = vmatmul.bf16.gmra.mxu0 %v872
    %v896 = vpop.f32.mrf.mxu0
    %v897 = vadd.f32 0.0, %v896
    %v898 = vpop.f32.mrf.mxu0
    %899 = vdwg.mxu0
    %v902 = vrot.slane %v884, 4
    %v903 = vrot.slane %v897, 4
    %v906 = vadd.f32 %v193, %v902
    %v907 = vadd.f32 %v207, %v903
    %v908 = vtanh.pop %v906
    %v909 = vtanh.pop %v907
    %v910 = vxor.u32 %v906, 2147483648
    %v911 = vxor.u32 %v907, 2147483648
    %v912 = vmul.f32 %v910, 1.442695
    %v913 = vpow.pop %v912
    %v914 = vmul.f32 %v911, 1.442695
    %v915 = vpow.pop %v914
    %v916 = vadd.f32 %v913, 1.0
    %v917 = vadd.f32 %v915, 1.0
    %v918 = vrcp.pop %v916
    %v919 = vmul.f32 %v916, %v918
    %v920 = vsub.f32 1.0, %v919
    %v921 = vmul.f32 %v918, %v920
    %v922 = vadd.f32 %v918, %v921
    %vm923 = vweird.f32 %v916
    %vm924 = vweird.f32 %v918
    %vm925 = vmor %vm923, %vm924
    %v926 = vsel %vm925, %v918, %v922
    %v927 = vand.u32 2147483647, %v916
    %vm928 = vcmp.eq.f32.partialorder %v927, 8.507059e+37
    %v929 = vand.u32 %v916, 2147483648
    %v930 = vor.u32 1.1754944e-38, %v929
    %v931 = vsel %vm928, %v930, %v926
    %v932 = vmul.f32 1.0, %v931
    %v933 = vrcp.pop %v917
    %v934 = vmul.f32 %v917, %v933
    %v935 = vsub.f32 1.0, %v934
    %v936 = vmul.f32 %v933, %v935
    %v937 = vadd.f32 %v933, %v936
    %vm938 = vweird.f32 %v917
    %vm939 = vweird.f32 %v933
    %vm940 = vmor %vm938, %vm939
    %v941 = vsel %vm940, %v933, %v937
    %v942 = vand.u32 2147483647, %v917
    %vm943 = vcmp.eq.f32.partialorder %v942, 8.507059e+37
    %v944 = vand.u32 %v917, 2147483648
    %v945 = vor.u32 1.1754944e-38, %v944
    %v946 = vsel %vm943, %v945, %v941
    %v947 = vmul.f32 1.0, %v946
    %v948 = vsel %vm218, %v908, %v932
    %v949 = vsel %vm219, %v909, %v947
    %v951 = vrot.slane %v857, 6
    %v953 = vmul.f32 %v948, %v951
    %955 = vrot.lane.b32.xlu0 %v949, 64
    %v956 = vpop.permute.xlu0 %955
    %v958 = vmul.f32 %v948, %v956
    %960 = vrot.lane.b32.xlu0 %v958, 64
    %v961 = vpop.permute.xlu0 %960
    %v963 = vadd.f32 %v953, %v961
    %v964 = vtanh.pop %v963
    %966 = vrot.lane.b32.xlu0 %v964, 64
    %v967 = vpop.permute.xlu0 %966
    %v969 = vmul.f32 %v949, %v967
    %v971 = vrot.slane %v969, 4
    %v973 = vmax.f32 %v867, %v971
    %v974 = vpack.c.bf16 %v969, %v969
    %v976 = vrot.slane %v974, 2
    %v978 = vsel %vm177, %v976, 0
    %980 = vmatpush.bf16.msra.mxu0 0
    %981 = vmatpush.bf16.msra.mxu0 0
    %982 = vmatpush.bf16.msra.mxu0 0
    %983 = vmatpush.bf16.msra.mxu0 0
    %984 = vmatpush.bf16.msra.mxu0 %v250
    %985 = vmatpush.bf16.msra.mxu0 %v248
    %986 = vmatpush.bf16.msra.mxu0 %v246
    %987 = vmatpush.bf16.msra.mxu0 %v244
    %988 = vmatmul.bf16.gmra.mxu0 %v978
    %v989 = vpop.f32.mrf.mxu0
    %v990 = vadd.f32 0.0, %v989
    %v991 = vpop.f32.mrf.mxu0
    %992 = vdwg.mxu0
    %993 = vmatpush.bf16.msra.mxu0 0
    %994 = vmatpush.bf16.msra.mxu0 0
    %995 = vmatpush.bf16.msra.mxu0 0
    %996 = vmatpush.bf16.msra.mxu0 0
    %997 = vmatpush.bf16.msra.mxu0 %v251
    %998 = vmatpush.bf16.msra.mxu0 %v249
    %999 = vmatpush.bf16.msra.mxu0 %v247
    %1000 = vmatpush.bf16.msra.mxu0 %v245
    %1001 = vmatmul.bf16.gmra.mxu0 %v978
    %v1002 = vpop.f32.mrf.mxu0
    %v1003 = vadd.f32 0.0, %v1002
    %v1004 = vpop.f32.mrf.mxu0
    %1005 = vdwg.mxu0
    %v1008 = vrot.slane %v990, 2
    %v1009 = vrot.slane %v1003, 2
    %v1012 = vadd.f32 %v193, %v1008
    %v1013 = vadd.f32 %v207, %v1009
    %v1014 = vtanh.pop %v1012
    %v1015 = vtanh.pop %v1013
    %v1016 = vxor.u32 %v1012, 2147483648
    %v1017 = vxor.u32 %v1013, 2147483648
    %v1018 = vmul.f32 %v1016, 1.442695
    %v1019 = vpow.pop %v1018
    %v1020 = vmul.f32 %v1017, 1.442695
    %v1021 = vpow.pop %v1020
    %v1022 = vadd.f32 %v1019, 1.0
    %v1023 = vadd.f32 %v1021, 1.0
    %v1024 = vrcp.pop %v1022
    %v1025 = vmul.f32 %v1022, %v1024
    %v1026 = vsub.f32 1.0, %v1025
    %v1027 = vmul.f32 %v1024, %v1026
    %v1028 = vadd.f32 %v1024, %v1027
    %vm1029 = vweird.f32 %v1022
    %vm1030 = vweird.f32 %v1024
    %vm1031 = vmor %vm1029, %vm1030
    %v1032 = vsel %vm1031, %v1024, %v1028
    %v1033 = vand.u32 2147483647, %v1022
    %vm1034 = vcmp.eq.f32.partialorder %v1033, 8.507059e+37
    %v1035 = vand.u32 %v1022, 2147483648
    %v1036 = vor.u32 1.1754944e-38, %v1035
    %v1037 = vsel %vm1034, %v1036, %v1032
    %v1038 = vmul.f32 1.0, %v1037
    %v1039 = vrcp.pop %v1023
    %v1040 = vmul.f32 %v1023, %v1039
    %v1041 = vsub.f32 1.0, %v1040
    %v1042 = vmul.f32 %v1039, %v1041
    %v1043 = vadd.f32 %v1039, %v1042
    %vm1044 = vweird.f32 %v1023
    %vm1045 = vweird.f32 %v1039
    %vm1046 = vmor %vm1044, %vm1045
    %v1047 = vsel %vm1046, %v1039, %v1043
    %v1048 = vand.u32 2147483647, %v1023
    %vm1049 = vcmp.eq.f32.partialorder %v1048, 8.507059e+37
    %v1050 = vand.u32 %v1023, 2147483648
    %v1051 = vor.u32 1.1754944e-38, %v1050
    %v1052 = vsel %vm1049, %v1051, %v1047
    %v1053 = vmul.f32 1.0, %v1052
    %v1054 = vsel %vm218, %v1014, %v1038
    %v1055 = vsel %vm219, %v1015, %v1053
    %v1057 = vrot.slane %v963, 6
    %v1059 = vmul.f32 %v1054, %v1057
    %1061 = vrot.lane.b32.xlu0 %v1055, 64
    %v1062 = vpop.permute.xlu0 %1061
    %v1064 = vmul.f32 %v1054, %v1062
    %1066 = vrot.lane.b32.xlu0 %v1064, 64
    %v1067 = vpop.permute.xlu0 %1066
    %v1069 = vadd.f32 %v1059, %v1067
    %v1070 = vtanh.pop %v1069
    %1072 = vrot.lane.b32.xlu0 %v1070, 64
    %v1073 = vpop.permute.xlu0 %1072
    %v1075 = vmul.f32 %v1055, %v1073
    %v1077 = vrot.slane %v1075, 6
    %v1079 = vmax.f32 %v973, %v1077
    %v1081 = vrot.slane %v100, 2
    %v1083 = vmax.f32 %v100, %v1081
    %v1084 = vrot.slane %v100, 4
    %v1086 = vmax.f32 %v1083, %v1084
    %v1087 = vrot.slane %v100, 6
    %v1089 = vmax.f32 %v1086, %v1087
    %v1090 = vmax.f32 %v1089, %v103
    %v1092 = vrot.slane %v103, 2
    %v1094 = vmax.f32 %v1090, %v1092
    %v1095 = vrot.slane %v103, 4
    %v1097 = vmax.f32 %v1094, %v1095
    %v1098 = vrot.slane %v103, 6
    %v1100 = vmax.f32 %v1097, %v1098
    %v1101 = vmax.f32 %v1100, 0.0
    %1103 = vrot.lane.b32.xlu0 %v1079, 32
    %v1104 = vpop.permute.xlu0 %1103
    %v1106 = vsel %vm119, %v1101, %v1104
    %v1107 = vpack.c.bf16 %v1106, %v1106
    %v1108 = vld [vmem:[%s5] sm:$0xf]
    %v1109 = vld [vmem:[%s5 + $0x4] sm:$0xf]
    %v1110 = vld [vmem:[%s5 + $0x8] sm:$0xf]
    %v1111 = vld [vmem:[%s5 + $0xc] sm:$0xf]
    %v1112 = vld [vmem:[%s5 + $0x10] sm:$0xf]
    %v1113 = vld [vmem:[%s5 + $0x14] sm:$0xf]
    %v1114 = vld [vmem:[%s5 + $0x18] sm:$0xf]
    %v1115 = vld [vmem:[%s5 + $0x1c] sm:$0xf]
    %v1116 = vld [vmem:[%s5 + $0x20] sm:$0xf]
    %v1117 = vld [vmem:[%s5 + $0x24] sm:$0xf]
    %v1118 = vld [vmem:[%s5 + $0x28] sm:$0xf]
    %v1119 = vld [vmem:[%s5 + $0x2c] sm:$0xf]
    %v1120 = vld [vmem:[%s6] sm:$0x1]
    %v1122 = vperm.slane %v1120, 0
    %v1136 = vunpack.c.l.b16 %v1108
    %v1137 = vunpack.c.l.b16 %v1109
    %v1138 = vunpack.c.l.b16 %v1110
    %v1139 = vunpack.c.l.b16 %v1111
    %v1140 = vunpack.c.l.b16 %v1112
    %v1141 = vunpack.c.l.b16 %v1113
    %v1142 = vunpack.c.l.b16 %v1114
    %v1143 = vunpack.c.l.b16 %v1115
    %v1144 = vunpack.c.l.b16 %v1116
    %v1145 = vunpack.c.l.b16 %v1117
    %v1146 = vunpack.c.l.b16 %v1118
    %v1147 = vunpack.c.l.b16 %v1119
    %v1148 = vpack.c.b16 %v1137, %v1136
    %v1149 = vpack.c.b16 %v1139, %v1138
    %v1150 = vpack.c.b16 %v1141, %v1140
    %v1151 = vpack.c.b16 %v1143, %v1142
    %v1152 = vpack.c.b16 %v1145, %v1144
    %v1153 = vpack.c.b16 %v1147, %v1146
    %vm1160 = vcmask 785408
    %v1162 = vsel %vm1160, %v1107, 0
    %1164 = vmatpush.bf16.msra.mxu0 0
    %1165 = vmatpush.bf16.msra.mxu0 0
    %1166 = vmatpush.bf16.msra.mxu0 %v1153
    %1167 = vmatpush.bf16.msra.mxu0 %v1152
    %1168 = vmatpush.bf16.msra.mxu0 %v1151
    %1169 = vmatpush.bf16.msra.mxu0 %v1150
    %1170 = vmatpush.bf16.msra.mxu0 %v1149
    %1171 = vmatpush.bf16.msra.mxu0 %v1148
    %1172 = vmatmul.bf16.gmra.mxu0 %v1162
    %v1173 = vpop.f32.mrf.mxu0
    %v1174 = vadd.f32 %v1122, %v1173
    %v1175 = vpop.f32.mrf.mxu0
    %1176 = vdwg.mxu0
    %vm1177 = vcmask 25600
    %1178 = vst.msk [vmem:[#allocation2] sm:$0x3] %vm1177, %v1174
    // Predicated region
    $region30: #{textrcnn_forward.1} parent=1 // pred_check
      _
    $region31: #{textrcnn_forward.1} parent=1 // pred_check_branch
      %1180 = sbr.rel (0) target = $region33
    $region32: #{textrcnn_forward.1} parent=1 // pred_region
      %1182 = vsyncadd [#allocation3], 0
      %s1184 = sshll.u32 [#allocation2], 4
      %s1185 = int_to_ptr.vmem [resolvable:$true] %s1184
      %s1186 = sshll.u32 %s7, 4
      %s1187 = int_to_ptr.hbm [resolvable:$true] %s1186
      %1189 = dma.vmem_to_hbm [thread:$0]  %s1185, 32, %s1187, [#allocation3]
    $region33: #{textrcnn_forward.1} parent=1 // pred_fallthru
      _
    // Predicated region
    $region34: #{textrcnn_forward.1} parent=1 // pred_check
      _
    $region35: #{textrcnn_forward.1} parent=1 // pred_check_branch
      %1191 = sbr.rel (0) target = $region37
    $region36: #{textrcnn_forward.1} parent=1 // pred_region
      %1193 = dma.done [#allocation3], 32
    $region37: #{textrcnn_forward.1} parent=1 // pred_fallthru
      _
    %1194 = vsyncpa [#allocation3], 1

</llo_original>
